<compile_context>
chip_gen: v5e
topology: v5e:2x2
jax: 0.10.0
libtpu: 0.0.40
codegen_flags: <defaults>
</compile_context>

<pallas_src>
import jax
import jax.numpy as jnp
from jax.experimental import pallas as pl
from jax.experimental.pallas import tpu as pltpu


DIMS = [192, 64, 32, 16, 8, 1]


def mlp_kernel(x_ref,
               w0_ref, b0_ref,
               w1_ref, b1_ref,
               w2_ref, b2_ref,
               w3_ref, b3_ref,
               w4_ref, b4_ref,
               o_ref):
    # One batch tile per grid step; all weights/biases live in VMEM for the
    # whole grid (constant index_maps).
    cdt = w0_ref.dtype                       # compute dtype (f32 or bf16)
    h = x_ref[...].astype(cdt)               # cast in VMEM, not in a wrapper op

    def mxu_layer(h, w_ref, b_ref, out_dtype):
        y = jnp.dot(h, w_ref[...], preferred_element_type=jnp.float32)
        y = jax.nn.sigmoid(y + b_ref[...])   # bias + sigmoid kept in f32 (v5e-safe)
        return y.astype(out_dtype)

    h = mxu_layer(h, w0_ref, b0_ref, cdt)           # (TB, 64)
    h = mxu_layer(h, w1_ref, b1_ref, cdt)           # (TB, 32)
    h = mxu_layer(h, w2_ref, b2_ref, cdt)           # (TB, 16)
    h = mxu_layer(h, w3_ref, b3_ref, jnp.float32)   # (TB, 8), stays f32
    # TODO(synk): the 16->8 layer could also move off the MXU, but it is not the
    # binding unit here (kernel is HBM-read bound).
    # Final 8->1 layer on the VPU/XLU: broadcast-multiply by the (1, 8) weight
    # row and reduce over lanes; avoids an MXU push/pop latency bubble and a
    # bf16 round trip on the final output.
    logit = jnp.sum(h * w4_ref[...], axis=-1, keepdims=True) + b4_ref[...]
    o_ref[...] = jax.nn.sigmoid(logit)              # (TB, 1) f32


def _round_up(n, m):
    return ((n + m - 1) // m) * m


def mlp_forward(x, params, *, compute_dtype=jnp.float32, tb_max=2048):
    """params: list of (W_t, b) with W_t of shape (in, out), b of shape (1, out)."""
    B, F = x.shape
    assert F == DIMS[0]

    # Batch tile: multiple of 8 (f32 sublanes).  Large tiles amortize the
    # ~0.35 us per-step overhead; for big batches keep >= 4 grid steps so the
    # "parallel" batch axis gives each v7x TensorCore >= 2 steps to pipeline.
    TB = min(tb_max, _round_up(B, 8))
    if B >= 4 * 1024:
        TB = min(TB, max(1024, _round_up(pl.cdiv(B, 4), 8)))

    # Hot path (B >= TB): no padding, no dtype copy of x — the kernel casts the
    # tile in VMEM and the ragged last block is clipped on writeback.
    x_in = x
    b_rows = B
    if B < TB:  # tiny-batch edge case only: single block must cover the array
        x_in = jnp.pad(x, ((0, TB - B), (0, 0)))
        b_rows = TB
    grid = pl.cdiv(b_rows, TB)

    flat = [x_in]
    in_specs = [pl.BlockSpec((TB, F), lambda i: (i, 0))]
    n_layers = len(params)
    for li, (w, b) in enumerate(params):
        if li == n_layers - 1:
            # Last layer is computed on the VPU: pass the weight as a (1, 8) row
            # and the bias as (1, 1), both f32.
            w_c = w.reshape(1, -1).astype(jnp.float32)
            b_c = b.reshape(1, 1).astype(jnp.float32)
        else:
            w_c = w.astype(compute_dtype)        # tiny; wrapper-side cast is free
            b_c = b.astype(jnp.float32)          # biases stay f32 (added post-matmul)
        flat.extend([w_c, b_c])
        # Full-array blocks with constant index maps -> DMA'd once, VMEM-resident.
        in_specs.append(pl.BlockSpec(w_c.shape, lambda i: (0, 0)))
        in_specs.append(pl.BlockSpec(b_c.shape, lambda i: (0, 0)))

    # Advisory cost estimate: HBM-read bound (x dominates), tiny FLOP count.
    flops = 2 * B * sum(DIMS[i] * DIMS[i + 1] for i in range(len(DIMS) - 1))
    transcendentals = B * sum(DIMS[1:])
    w_bytes = sum(int(w.size) * jnp.dtype(compute_dtype).itemsize + int(b.size) * 4
                  for w, b in params)
    bytes_accessed = B * F * x.dtype.itemsize + B * DIMS[-1] * 4 + w_bytes

    out = pl.pallas_call(
        mlp_kernel,
        out_shape=jax.ShapeDtypeStruct((b_rows, DIMS[-1]), jnp.float32),
        grid=(grid,),
        in_specs=in_specs,
        out_specs=pl.BlockSpec((TB, DIMS[-1]), lambda i: (i, 0)),
        compiler_params=pltpu.CompilerParams(
            # v7x: shard batch tiles across its 2 TensorCores (no-op on v5e/v6e).
            # VMEM: <= ~3 MB of double-buffered tiles, well under every chip's
            # scoped default, so no explicit vmem_limit_bytes needed.
            dimension_semantics=("parallel",)),
        cost_estimate=pl.CostEstimate(flops=flops,
                                      transcendentals=transcendentals,
                                      bytes_accessed=bytes_accessed),
    )(*flat)
    return out[:B] if b_rows != B else out


def init_params(key):
    """Deterministic init mirroring nn.Linear default (uniform +/- 1/sqrt(fan_in))."""
    params = []
    for i in range(len(DIMS) - 1):
        fan_in, fan_out = DIMS[i], DIMS[i + 1]
        key, kw, kb = jax.random.split(key, 3)
        bound = 1.0 / jnp.sqrt(fan_in)
        # Stored as (in, out) == PyTorch weight.T
        w_t = jax.random.uniform(kw, (fan_in, fan_out), jnp.float32, -bound, bound)
        b = jax.random.uniform(kb, (1, fan_out), jnp.float32, -bound, bound)
        params.append((w_t, b))
    return params


def reference_forward(x, params):
    h = x
    for w, b in params:
        h = jax.nn.sigmoid(h @ w + b)
    return h


if __name__ == "__main__":
    key = jax.random.PRNGKey(0)
    key, kx = jax.random.split(key)
    params = init_params(key)

    # 1) Module-shaped small-batch check (f32 path), tight tolerance.
    batch = 2
    x = jax.random.normal(kx, (batch, 192), dtype=jnp.float32)
    out = jax.block_until_ready(mlp_forward(x, params))
    ref = reference_forward(x, params)
    assert out.shape == (batch, 1)
    assert jnp.allclose(out, ref, atol=1e-5, rtol=1e-5)

    # 2) Large, deliberately ragged batch on the bf16 matmul path: multi-step
    #    pipelined grid, in-kernel cast (no wrapper copies), partial tail block,
    #    weights VMEM-resident, f32 accumulation and f32 sigmoids.
    key, kx2 = jax.random.split(key)
    big = 4100
    xb = jax.random.normal(kx2, (big, 192), dtype=jnp.float32)
    outb = jax.block_until_ready(
        mlp_forward(xb, params, compute_dtype=jnp.bfloat16, tb_max=2048))
    refb = reference_forward(xb, params)
    assert outb.shape == (big, 1)
    assert jnp.allclose(outb, refb, atol=2e-2, rtol=2e-2)

    print("KERNEL_OK")
</pallas_src>

<mosaic_0001>
module attributes {stable_mosaic.version = 11 : i64} {
  func.func @mlp_kernel(%arg0: i32, %arg1: memref<8x192xf32, #tpu.memory_space<vmem>>, %arg2: memref<192x64xf32, #tpu.memory_space<vmem>>, %arg3: memref<1x64xf32, #tpu.memory_space<vmem>>, %arg4: memref<64x32xf32, #tpu.memory_space<vmem>>, %arg5: memref<1x32xf32, #tpu.memory_space<vmem>>, %arg6: memref<32x16xf32, #tpu.memory_space<vmem>>, %arg7: memref<1x16xf32, #tpu.memory_space<vmem>>, %arg8: memref<16x8xf32, #tpu.memory_space<vmem>>, %arg9: memref<1x8xf32, #tpu.memory_space<vmem>>, %arg10: memref<1x8xf32, #tpu.memory_space<vmem>>, %arg11: memref<1x1xf32, #tpu.memory_space<vmem>>, %arg12: memref<8x1xf32, #tpu.memory_space<vmem>>) attributes {dimension_semantics = [#tpu.dimension_semantics<parallel>], iteration_bounds = array<i64: 1>, scalar_prefetch = 0 : i64, scratch_operands = 0 : i64, tpu.core_type = #tpu.core_type<tc>, window_params = [{transform_indices = @transform_0, window_bounds = array<i64: 8, 192>}, {pipeline_mode = #tpu.pipeline_mode<synchronous>, transform_indices = @transform_1, window_bounds = array<i64: 192, 64>}, {pipeline_mode = #tpu.pipeline_mode<synchronous>, transform_indices = @transform_2, window_bounds = array<i64: 1, 64>}, {pipeline_mode = #tpu.pipeline_mode<synchronous>, transform_indices = @transform_3, window_bounds = array<i64: 64, 32>}, {pipeline_mode = #tpu.pipeline_mode<synchronous>, transform_indices = @transform_4, window_bounds = array<i64: 1, 32>}, {pipeline_mode = #tpu.pipeline_mode<synchronous>, transform_indices = @transform_5, window_bounds = array<i64: 32, 16>}, {pipeline_mode = #tpu.pipeline_mode<synchronous>, transform_indices = @transform_6, window_bounds = array<i64: 1, 16>}, {pipeline_mode = #tpu.pipeline_mode<synchronous>, transform_indices = @transform_7, window_bounds = array<i64: 16, 8>}, {pipeline_mode = #tpu.pipeline_mode<synchronous>, transform_indices = @transform_8, window_bounds = array<i64: 1, 8>}, {pipeline_mode = #tpu.pipeline_mode<synchronous>, transform_indices = @transform_9, window_bounds = array<i64: 1, 8>}, {pipeline_mode = #tpu.pipeline_mode<synchronous>, transform_indices = @transform_10, window_bounds = array<i64: 1, 1>}, {transform_indices = @transform_11, window_bounds = array<i64: 8, 1>}]} {
    %c0 = arith.constant 0 : index
    %c0_0 = arith.constant 0 : index
    %0 = vector.load %arg1[%c0, %c0_0] : memref<8x192xf32, #tpu.memory_space<vmem>>, vector<8x192xf32>
    %c0_1 = arith.constant 0 : index
    %c0_2 = arith.constant 0 : index
    %1 = vector.load %arg2[%c0_1, %c0_2] : memref<192x64xf32, #tpu.memory_space<vmem>>, vector<192x64xf32>
    %cst = arith.constant dense<0.000000e+00> : vector<8x64xf32>
    %2 = tpu.matmul %0, %1, %cst {dimension_numbers = #tpu.dot_dimension_numbers<[1], [0], [0], [1], [0, 0, 1, 1], [], []>} : vector<8x192xf32>, vector<192x64xf32>, vector<8x64xf32> -> vector<8x64xf32>
    %c0_3 = arith.constant 0 : index
    %c0_4 = arith.constant 0 : index
    %3 = vector.load %arg3[%c0_3, %c0_4] : memref<1x64xf32, #tpu.memory_space<vmem>>, vector<1x64xf32>
    %4 = vector.broadcast %3 : vector<1x64xf32> to vector<8x64xf32>
    %5 = arith.addf %2, %4 : vector<8x64xf32>
    %6 = arith.negf %5 : vector<8x64xf32>
    %7 = math.exp %6 : vector<8x64xf32>
    %cst_5 = arith.constant 1.000000e+00 : f32
    %8 = vector.broadcast %cst_5 : f32 to vector<8x64xf32>
    %9 = arith.addf %8, %7 : vector<8x64xf32>
    %10 = arith.divf %8, %9 : vector<8x64xf32>
    %c0_6 = arith.constant 0 : index
    %c0_7 = arith.constant 0 : index
    %11 = vector.load %arg4[%c0_6, %c0_7] : memref<64x32xf32, #tpu.memory_space<vmem>>, vector<64x32xf32>
    %cst_8 = arith.constant dense<0.000000e+00> : vector<8x32xf32>
    %12 = tpu.matmul %10, %11, %cst_8 {dimension_numbers = #tpu.dot_dimension_numbers<[1], [0], [0], [1], [0, 0, 1, 1], [], []>} : vector<8x64xf32>, vector<64x32xf32>, vector<8x32xf32> -> vector<8x32xf32>
    %c0_9 = arith.constant 0 : index
    %c0_10 = arith.constant 0 : index
    %13 = vector.load %arg5[%c0_9, %c0_10] : memref<1x32xf32, #tpu.memory_space<vmem>>, vector<1x32xf32>
    %14 = vector.broadcast %13 : vector<1x32xf32> to vector<8x32xf32>
    %15 = arith.addf %12, %14 : vector<8x32xf32>
    %16 = arith.negf %15 : vector<8x32xf32>
    %17 = math.exp %16 : vector<8x32xf32>
    %cst_11 = arith.constant 1.000000e+00 : f32
    %18 = vector.broadcast %cst_11 : f32 to vector<8x32xf32>
    %19 = arith.addf %18, %17 : vector<8x32xf32>
    %20 = arith.divf %18, %19 : vector<8x32xf32>
    %c0_12 = arith.constant 0 : index
    %c0_13 = arith.constant 0 : index
    %21 = vector.load %arg6[%c0_12, %c0_13] : memref<32x16xf32, #tpu.memory_space<vmem>>, vector<32x16xf32>
    %cst_14 = arith.constant dense<0.000000e+00> : vector<8x16xf32>
    %22 = tpu.matmul %20, %21, %cst_14 {dimension_numbers = #tpu.dot_dimension_numbers<[1], [0], [0], [1], [0, 0, 1, 1], [], []>} : vector<8x32xf32>, vector<32x16xf32>, vector<8x16xf32> -> vector<8x16xf32>
    %c0_15 = arith.constant 0 : index
    %c0_16 = arith.constant 0 : index
    %23 = vector.load %arg7[%c0_15, %c0_16] : memref<1x16xf32, #tpu.memory_space<vmem>>, vector<1x16xf32>
    %24 = vector.broadcast %23 : vector<1x16xf32> to vector<8x16xf32>
    %25 = arith.addf %22, %24 : vector<8x16xf32>
    %26 = arith.negf %25 : vector<8x16xf32>
    %27 = math.exp %26 : vector<8x16xf32>
    %cst_17 = arith.constant 1.000000e+00 : f32
    %28 = vector.broadcast %cst_17 : f32 to vector<8x16xf32>
    %29 = arith.addf %28, %27 : vector<8x16xf32>
    %30 = arith.divf %28, %29 : vector<8x16xf32>
    %c0_18 = arith.constant 0 : index
    %c0_19 = arith.constant 0 : index
    %31 = vector.load %arg8[%c0_18, %c0_19] : memref<16x8xf32, #tpu.memory_space<vmem>>, vector<16x8xf32>
    %cst_20 = arith.constant dense<0.000000e+00> : vector<8x8xf32>
    %32 = tpu.matmul %30, %31, %cst_20 {dimension_numbers = #tpu.dot_dimension_numbers<[1], [0], [0], [1], [0, 0, 1, 1], [], []>} : vector<8x16xf32>, vector<16x8xf32>, vector<8x8xf32> -> vector<8x8xf32>
    %c0_21 = arith.constant 0 : index
    %c0_22 = arith.constant 0 : index
    %33 = vector.load %arg9[%c0_21, %c0_22] : memref<1x8xf32, #tpu.memory_space<vmem>>, vector<1x8xf32>
    %34 = vector.broadcast %33 : vector<1x8xf32> to vector<8x8xf32>
    %35 = arith.addf %32, %34 : vector<8x8xf32>
    %36 = arith.negf %35 : vector<8x8xf32>
    %37 = math.exp %36 : vector<8x8xf32>
    %cst_23 = arith.constant 1.000000e+00 : f32
    %38 = vector.broadcast %cst_23 : f32 to vector<8x8xf32>
    %39 = arith.addf %38, %37 : vector<8x8xf32>
    %40 = arith.divf %38, %39 : vector<8x8xf32>
    %c0_24 = arith.constant 0 : index
    %c0_25 = arith.constant 0 : index
    %41 = vector.load %arg10[%c0_24, %c0_25] : memref<1x8xf32, #tpu.memory_space<vmem>>, vector<1x8xf32>
    %42 = vector.broadcast %41 : vector<1x8xf32> to vector<8x8xf32>
    %43 = arith.mulf %40, %42 : vector<8x8xf32>
    %cst_26 = arith.constant dense<0.000000e+00> : vector<8xf32>
    %44 = vector.multi_reduction <add>, %43, %cst_26 [1] : vector<8x8xf32> to vector<8xf32>
    %45 = vector.shape_cast %44 : vector<8xf32> to vector<8x1xf32>
    %c0_27 = arith.constant 0 : index
    %c0_28 = arith.constant 0 : index
    %46 = vector.load %arg11[%c0_27, %c0_28] : memref<1x1xf32, #tpu.memory_space<vmem>>, vector<1x1xf32>
    %47 = vector.broadcast %46 : vector<1x1xf32> to vector<8x1xf32>
    %48 = arith.addf %45, %47 : vector<8x1xf32>
    %49 = arith.negf %48 : vector<8x1xf32>
    %50 = math.exp %49 : vector<8x1xf32>
    %cst_29 = arith.constant 1.000000e+00 : f32
    %51 = vector.broadcast %cst_29 : f32 to vector<8x1xf32>
    %52 = arith.addf %51, %50 : vector<8x1xf32>
    %53 = arith.divf %51, %52 : vector<8x1xf32>
    %c0_30 = arith.constant 0 : index
    %c0_31 = arith.constant 0 : index
    %54 = vector.load %arg12[%c0_30, %c0_31] : memref<8x1xf32, #tpu.memory_space<vmem>>, vector<8x1xf32>
    tpu.vector_store %arg12[%c0_30, %c0_31], %53 {strides = array<i32>} : memref<8x1xf32, #tpu.memory_space<vmem>>, vector<8x1xf32>,
    return
  }
  func.func @transform_0(%arg0: i32) -> (i32, i32) {
    %c0_i32 = arith.constant 0 : i32
    %c0_i32_0 = arith.constant 0 : i32
    return %arg0, %c0_i32 : i32, i32
  }
  func.func @transform_1(%arg0: i32) -> (i32, i32) {
    %c0_i32 = arith.constant 0 : i32
    %c0_i32_0 = arith.constant 0 : i32
    %c0_i32_1 = arith.constant 0 : i32
    return %c0_i32, %c0_i32_0 : i32, i32
  }
  func.func @transform_2(%arg0: i32) -> (i32, i32) {
    %c0_i32 = arith.constant 0 : i32
    %c0_i32_0 = arith.constant 0 : i32
    %c0_i32_1 = arith.constant 0 : i32
    return %c0_i32, %c0_i32_0 : i32, i32
  }
  func.func @transform_3(%arg0: i32) -> (i32, i32) {
    %c0_i32 = arith.constant 0 : i32
    %c0_i32_0 = arith.constant 0 : i32
    %c0_i32_1 = arith.constant 0 : i32
    return %c0_i32, %c0_i32_0 : i32, i32
  }
  func.func @transform_4(%arg0: i32) -> (i32, i32) {
    %c0_i32 = arith.constant 0 : i32
    %c0_i32_0 = arith.constant 0 : i32
    %c0_i32_1 = arith.constant 0 : i32
    return %c0_i32, %c0_i32_0 : i32, i32
  }
  func.func @transform_5(%arg0: i32) -> (i32, i32) {
    %c0_i32 = arith.constant 0 : i32
    %c0_i32_0 = arith.constant 0 : i32
    %c0_i32_1 = arith.constant 0 : i32
    return %c0_i32, %c0_i32_0 : i32, i32
  }
  func.func @transform_6(%arg0: i32) -> (i32, i32) {
    %c0_i32 = arith.constant 0 : i32
    %c0_i32_0 = arith.constant 0 : i32
    %c0_i32_1 = arith.constant 0 : i32
    return %c0_i32, %c0_i32_0 : i32, i32
  }
  func.func @transform_7(%arg0: i32) -> (i32, i32) {
    %c0_i32 = arith.constant 0 : i32
    %c0_i32_0 = arith.constant 0 : i32
    %c0_i32_1 = arith.constant 0 : i32
    return %c0_i32, %c0_i32_0 : i32, i32
  }
  func.func @transform_8(%arg0: i32) -> (i32, i32) {
    %c0_i32 = arith.constant 0 : i32
    %c0_i32_0 = arith.constant 0 : i32
    %c0_i32_1 = arith.constant 0 : i32
    return %c0_i32, %c0_i32_0 : i32, i32
  }
  func.func @transform_9(%arg0: i32) -> (i32, i32) {
    %c0_i32 = arith.constant 0 : i32
    %c0_i32_0 = arith.constant 0 : i32
    %c0_i32_1 = arith.constant 0 : i32
    return %c0_i32, %c0_i32_0 : i32, i32
  }
  func.func @transform_10(%arg0: i32) -> (i32, i32) {
    %c0_i32 = arith.constant 0 : i32
    %c0_i32_0 = arith.constant 0 : i32
    %c0_i32_1 = arith.constant 0 : i32
    return %c0_i32, %c0_i32_0 : i32, i32
  }
  func.func @transform_11(%arg0: i32) -> (i32, i32) {
    %c0_i32 = arith.constant 0 : i32
    %c0_i32_0 = arith.constant 0 : i32
    return %arg0, %c0_i32 : i32, i32
  }
}

</mosaic_0001>

<llo_original>
// kernel: tpu_custom_call.1
$region0: #{tpu_custom_call.1}
  #allocation0 [shape = 'u32[]', space=smem, size = 0x4, offset = 0x4, fixed_abs, tag = 'smem constant byte address 0x4 - core index']
  #allocation1 [shape = 'u32[72,128]{1,0:T(1,128)}', space=vmem, size = 0x9000, scoped, tag = 'internal scratch']
  #allocation2 [shape = 'f32[1,1]{1,0:T(1,128)S(1)}', space=vmem, size = 0x200, scoped, tag = 'scoped memory for tpu_custom_call.1']
  %s0 = inlined_call_operand.vmem [shape: f32[8,192], index: 0, kind: input, shape index: {}]
  %s1 = inlined_call_operand.vmem [shape: f32[192,64], index: 1, kind: input, shape index: {}]
  %s2 = inlined_call_operand.vmem [shape: f32[1,64], index: 2, kind: input, shape index: {}]
  %s3 = inlined_call_operand.vmem [shape: f32[64,32], index: 3, kind: input, shape index: {}]
  %s4 = inlined_call_operand.vmem [shape: f32[1,32], index: 4, kind: input, shape index: {}]
  %s5 = inlined_call_operand.vmem [shape: f32[32,16], index: 5, kind: input, shape index: {}]
  %s6 = inlined_call_operand.vmem [shape: f32[1,16], index: 6, kind: input, shape index: {}]
  %s7 = inlined_call_operand.vmem [shape: f32[16,8], index: 7, kind: input, shape index: {}]
  %s8 = inlined_call_operand.vmem [shape: f32[1,8], index: 8, kind: input, shape index: {}]
  %s9 = inlined_call_operand.vmem [shape: f32[1,8], index: 9, kind: input, shape index: {}]
  %s10 = inlined_call_operand.<no memory space> [shape: f32[1,1], index: 10, kind: input, shape index: {}]
  %s11 = inlined_call_operand.vmem [shape: f32[8,1], index: 11, kind: output, shape index: {}]
  %s12 = sld [smem:[#allocation0]]
  $region54: #{tpu_custom_call.1} parent=0
    _
  %s14 = ssub.s32 1, %s12
  %s15 = scalar_select 0, %s14, %s12
  %v16 = vstv %s10
  %17 = vst [vmem:[#allocation2] sm:$0x1] %v16
  // Predicated region
  $region2: #{tpu_custom_call.1} parent=0 // pred_check
    _
  $region3: #{tpu_custom_call.1} parent=0 // pred_check_branch
    %19 = sbr.rel (0) target = $region5
  $region4: #{tpu_custom_call.1} parent=0 // pred_region
    _
  $region5: #{tpu_custom_call.1} parent=0 // pred_fallthru
    _
  // Predicated region
  $region6: #{tpu_custom_call.1} parent=0 // pred_check
    _
  $region7: #{tpu_custom_call.1} parent=0 // pred_check_branch
    %21 = sbr.rel (0) target = $region9
  $region8: #{tpu_custom_call.1} parent=0 // pred_region
    _
  $region9: #{tpu_custom_call.1} parent=0 // pred_fallthru
    _
  // Predicated region
  $region10: #{tpu_custom_call.1} parent=0 // pred_check
    _
  $region11: #{tpu_custom_call.1} parent=0 // pred_check_branch
    %23 = sbr.rel (0) target = $region13
  $region12: #{tpu_custom_call.1} parent=0 // pred_region
    _
  $region13: #{tpu_custom_call.1} parent=0 // pred_fallthru
    _
  // Predicated region
  $region14: #{tpu_custom_call.1} parent=0 // pred_check
    _
  $region15: #{tpu_custom_call.1} parent=0 // pred_check_branch
    %25 = sbr.rel (0) target = $region17
  $region16: #{tpu_custom_call.1} parent=0 // pred_region
    _
  $region17: #{tpu_custom_call.1} parent=0 // pred_fallthru
    _
  // Predicated region
  $region18: #{tpu_custom_call.1} parent=0 // pred_check
    _
  $region19: #{tpu_custom_call.1} parent=0 // pred_check_branch
    %27 = sbr.rel (0) target = $region21
  $region20: #{tpu_custom_call.1} parent=0 // pred_region
    _
  $region21: #{tpu_custom_call.1} parent=0 // pred_fallthru
    _
  // Predicated region
  $region22: #{tpu_custom_call.1} parent=0 // pred_check
    _
  $region23: #{tpu_custom_call.1} parent=0 // pred_check_branch
    %29 = sbr.rel (0) target = $region25
  $region24: #{tpu_custom_call.1} parent=0 // pred_region
    _
  $region25: #{tpu_custom_call.1} parent=0 // pred_fallthru
    _
  // Predicated region
  $region26: #{tpu_custom_call.1} parent=0 // pred_check
    _
  $region27: #{tpu_custom_call.1} parent=0 // pred_check_branch
    %31 = sbr.rel (0) target = $region29
  $region28: #{tpu_custom_call.1} parent=0 // pred_region
    _
  $region29: #{tpu_custom_call.1} parent=0 // pred_fallthru
    _
  // Predicated region
  $region30: #{tpu_custom_call.1} parent=0 // pred_check
    _
  $region31: #{tpu_custom_call.1} parent=0 // pred_check_branch
    %33 = sbr.rel (0) target = $region33
  $region32: #{tpu_custom_call.1} parent=0 // pred_region
    _
  $region33: #{tpu_custom_call.1} parent=0 // pred_fallthru
    _
  // Predicated region
  $region34: #{tpu_custom_call.1} parent=0 // pred_check
    _
  $region35: #{tpu_custom_call.1} parent=0 // pred_check_branch
    %35 = sbr.rel (0) target = $region37
  $region36: #{tpu_custom_call.1} parent=0 // pred_region
    _
  $region37: #{tpu_custom_call.1} parent=0 // pred_fallthru
    _
  // Predicated region
  $region38: #{tpu_custom_call.1} parent=0 // pred_check
    _
  $region39: #{tpu_custom_call.1} parent=0 // pred_check_branch
    %37 = sbr.rel (0) target = $region41
  $region40: #{tpu_custom_call.1} parent=0 // pred_region
    _
  $region41: #{tpu_custom_call.1} parent=0 // pred_fallthru
    _
  // Predicated region
  $region42: #{tpu_custom_call.1} parent=0 // pred_check
    _
  $region43: #{tpu_custom_call.1} parent=0 // pred_check_branch
    %39 = sbr.rel (0) target = $region45
  $region44: #{tpu_custom_call.1} parent=0 // pred_region
    _
  $region45: #{tpu_custom_call.1} parent=0 // pred_fallthru
    _
  %v40 = vld [vmem:[%s0] sm:$0xff]
  %v41 = vld [vmem:[%s0 + $0x8] sm:$0xff]
  %v42 = vld [vmem:[%s1] sm:$0xff]
  %v43 = vld [vmem:[%s1 + $0x8] sm:$0xff]
  %v44 = vld [vmem:[%s1 + $0x10] sm:$0xff]
  %v45 = vld [vmem:[%s1 + $0x18] sm:$0xff]
  %v46 = vld [vmem:[%s1 + $0x20] sm:$0xff]
  %v47 = vld [vmem:[%s1 + $0x28] sm:$0xff]
  %v48 = vld [vmem:[%s1 + $0x30] sm:$0xff]
  %v49 = vld [vmem:[%s1 + $0x38] sm:$0xff]
  %v50 = vld [vmem:[%s1 + $0x40] sm:$0xff]
  %v51 = vld [vmem:[%s1 + $0x48] sm:$0xff]
  %v52 = vld [vmem:[%s1 + $0x50] sm:$0xff]
  %v53 = vld [vmem:[%s1 + $0x58] sm:$0xff]
  %v54 = vld [vmem:[%s1 + $0x60] sm:$0xff]
  %v55 = vld [vmem:[%s1 + $0x68] sm:$0xff]
  %v56 = vld [vmem:[%s1 + $0x70] sm:$0xff]
  %v57 = vld [vmem:[%s1 + $0x78] sm:$0xff]
  %v58 = vld [vmem:[%s1 + $0x80] sm:$0xff]
  %v59 = vld [vmem:[%s1 + $0x88] sm:$0xff]
  %v60 = vld [vmem:[%s1 + $0x90] sm:$0xff]
  %v61 = vld [vmem:[%s1 + $0x98] sm:$0xff]
  %v62 = vld [vmem:[%s1 + $0xa0] sm:$0xff]
  %v63 = vld [vmem:[%s1 + $0xa8] sm:$0xff]
  %v64 = vld [vmem:[%s1 + $0xb0] sm:$0xff]
  %v65 = vld [vmem:[%s1 + $0xb8] sm:$0xff]
  %v66 = vld [vmem:[%s2] sm:$0x1]
  %v68 = vperm.slane %v66, 0
  %vm70 = vcmask 523264
  %v72 = vsel %vm70, %v41, 0
  %74 = vmatpush.msra.mxu0 %v57
  %75 = vmatpush.msra.mxu0 %v56
  %76 = vmatpush.msra.mxu0 %v55
  %77 = vmatpush.msra.mxu0 %v54
  %78 = vmatpush.msra.mxu0 %v53
  %79 = vmatpush.msra.mxu0 %v52
  %80 = vmatpush.msra.mxu0 %v51
  %81 = vmatpush.msra.mxu0 %v50
  %82 = vmatpush.msra.mxu0 %v49
  %83 = vmatpush.msra.mxu0 %v48
  %84 = vmatpush.msra.mxu0 %v47
  %85 = vmatpush.msra.mxu0 %v46
  %86 = vmatpush.msra.mxu0 %v45
  %87 = vmatpush.msra.mxu0 %v44
  %88 = vmatpush.msra.mxu0 %v43
  %89 = vmatpush.msra.mxu0 %v42
  %90 = vmatmul.f32.gmra.mxu0 %v40
  %v91 = vpop.f32.mrf.mxu0
  %v92 = vadd.f32 %v68, %v91
  %93 = vdwg.mxu0
  %94 = vmatpush.msra.mxu0 0.0
  %95 = vmatpush.msra.mxu0 0.0
  %96 = vmatpush.msra.mxu0 0.0
  %97 = vmatpush.msra.mxu0 0.0
  %98 = vmatpush.msra.mxu0 0.0
  %99 = vmatpush.msra.mxu0 0.0
  %100 = vmatpush.msra.mxu0 0.0
  %101 = vmatpush.msra.mxu0 0.0
  %102 = vmatpush.msra.mxu0 %v65
  %103 = vmatpush.msra.mxu0 %v64
  %104 = vmatpush.msra.mxu0 %v63
  %105 = vmatpush.msra.mxu0 %v62
  %106 = vmatpush.msra.mxu0 %v61
  %107 = vmatpush.msra.mxu0 %v60
  %108 = vmatpush.msra.mxu0 %v59
  %109 = vmatpush.msra.mxu0 %v58
  %110 = vmatmul.f32.gmra.mxu0 %v72
  %v111 = vpop.f32.mrf.mxu0
  %v112 = vadd.f32 %v92, %v111
  %113 = vdwg.mxu0
  %v114 = vxor.u32 %v112, 2147483648
  %v115 = vmul.f32 %v114, 1.442695
  %v116 = vpow.pop %v115
  %v117 = vadd.f32 %v116, 1.0
  %v118 = vrcp.pop %v117
  %v119 = vmul.f32 %v117, %v118
  %v120 = vsub.f32 1.0, %v119
  %v121 = vmul.f32 %v118, %v120
  %v122 = vadd.f32 %v118, %v121
  %vm123 = vweird.f32 %v117
  %vm124 = vweird.f32 %v118
  %vm125 = vmor %vm123, %vm124
  %v126 = vsel %vm125, %v118, %v122
  %v127 = vand.u32 2147483647, %v117
  %vm128 = vcmp.eq.f32.partialorder %v127, 8.507059e+37
  %v129 = vand.u32 %v117, 2147483648
  %v130 = vor.u32 1.1754944e-38, %v129
  %v131 = vsel %vm128, %v130, %v126
  %v132 = vmul.f32 1.0, %v131
  %v133 = vld [vmem:[%s3] sm:$0xff]
  %v134 = vld [vmem:[%s3 + $0x8] sm:$0xff]
  %v135 = vld [vmem:[%s3 + $0x10] sm:$0xff]
  %v136 = vld [vmem:[%s3 + $0x18] sm:$0xff]
  %v137 = vld [vmem:[%s3 + $0x20] sm:$0xff]
  %v138 = vld [vmem:[%s3 + $0x28] sm:$0xff]
  %v139 = vld [vmem:[%s3 + $0x30] sm:$0xff]
  %v140 = vld [vmem:[%s3 + $0x38] sm:$0xff]
  %v141 = vld [vmem:[%s4] sm:$0x1]
  %v143 = vperm.slane %v141, 0
  %v146 = vsel %vm70, %v132, 0
  %148 = vmatpush.msra.mxu0 0.0
  %149 = vmatpush.msra.mxu0 0.0
  %150 = vmatpush.msra.mxu0 0.0
  %151 = vmatpush.msra.mxu0 0.0
  %152 = vmatpush.msra.mxu0 0.0
  %153 = vmatpush.msra.mxu0 0.0
  %154 = vmatpush.msra.mxu0 0.0
  %155 = vmatpush.msra.mxu0 0.0
  %156 = vmatpush.msra.mxu0 %v140
  %157 = vmatpush.msra.mxu0 %v139
  %158 = vmatpush.msra.mxu0 %v138
  %159 = vmatpush.msra.mxu0 %v137
  %160 = vmatpush.msra.mxu0 %v136
  %161 = vmatpush.msra.mxu0 %v135
  %162 = vmatpush.msra.mxu0 %v134
  %163 = vmatpush.msra.mxu0 %v133
  %164 = vmatmul.f32.gmra.mxu0 %v146
  %v165 = vpop.f32.mrf.mxu0
  %v166 = vadd.f32 %v143, %v165
  %167 = vdwg.mxu0
  %v168 = vxor.u32 %v166, 2147483648
  %v169 = vmul.f32 %v168, 1.442695
  %v170 = vpow.pop %v169
  %v171 = vadd.f32 %v170, 1.0
  %v172 = vrcp.pop %v171
  %v173 = vmul.f32 %v171, %v172
  %v174 = vsub.f32 1.0, %v173
  %v175 = vmul.f32 %v172, %v174
  %v176 = vadd.f32 %v172, %v175
  %vm177 = vweird.f32 %v171
  %vm178 = vweird.f32 %v172
  %vm179 = vmor %vm177, %vm178
  %v180 = vsel %vm179, %v172, %v176
  %v181 = vand.u32 2147483647, %v171
  %vm182 = vcmp.eq.f32.partialorder %v181, 8.507059e+37
  %v183 = vand.u32 %v171, 2147483648
  %v184 = vor.u32 1.1754944e-38, %v183
  %v185 = vsel %vm182, %v184, %v180
  %v186 = vmul.f32 1.0, %v185
  %v187 = vld [vmem:[%s5] sm:$0xff]
  %v188 = vld [vmem:[%s5 + $0x8] sm:$0xff]
  %v189 = vld [vmem:[%s5 + $0x10] sm:$0xff]
  %v190 = vld [vmem:[%s5 + $0x18] sm:$0xff]
  %v191 = vld [vmem:[%s6] sm:$0x1]
  %v193 = vperm.slane %v191, 0
  %vm195 = vcmask 261120
  %v197 = vsel %vm195, %v186, 0
  %199 = vmatpush.msra.mxu0 0.0
  %200 = vmatpush.msra.mxu0 0.0
  %201 = vmatpush.msra.mxu0 0.0
  %202 = vmatpush.msra.mxu0 0.0
  %203 = vmatpush.msra.mxu0 0.0
  %204 = vmatpush.msra.mxu0 0.0
  %205 = vmatpush.msra.mxu0 0.0
  %206 = vmatpush.msra.mxu0 0.0
  %207 = vmatpush.msra.mxu0 0.0
  %208 = vmatpush.msra.mxu0 0.0
  %209 = vmatpush.msra.mxu0 0.0
  %210 = vmatpush.msra.mxu0 0.0
  %211 = vmatpush.msra.mxu0 %v190
  %212 = vmatpush.msra.mxu0 %v189
  %213 = vmatpush.msra.mxu0 %v188
  %214 = vmatpush.msra.mxu0 %v187
  %215 = vmatmul.f32.gmra.mxu0 %v197
  %v216 = vpop.f32.mrf.mxu0
  %v217 = vadd.f32 %v193, %v216
  %218 = vdwg.mxu0
  %v219 = vxor.u32 %v217, 2147483648
  %v220 = vmul.f32 %v219, 1.442695
  %v221 = vpow.pop %v220
  %v222 = vadd.f32 %v221, 1.0
  %v223 = vrcp.pop %v222
  %v224 = vmul.f32 %v222, %v223
  %v225 = vsub.f32 1.0, %v224
  %v226 = vmul.f32 %v223, %v225
  %v227 = vadd.f32 %v223, %v226
  %vm228 = vweird.f32 %v222
  %vm229 = vweird.f32 %v223
  %vm230 = vmor %vm228, %vm229
  %v231 = vsel %vm230, %v223, %v227
  %v232 = vand.u32 2147483647, %v222
  %vm233 = vcmp.eq.f32.partialorder %v232, 8.507059e+37
  %v234 = vand.u32 %v222, 2147483648
  %v235 = vor.u32 1.1754944e-38, %v234
  %v236 = vsel %vm233, %v235, %v231
  %v237 = vmul.f32 1.0, %v236
  %v238 = vld [vmem:[%s7] sm:$0xff]
  %v239 = vld [vmem:[%s7 + $0x8] sm:$0xff]
  %v240 = vld [vmem:[%s8] sm:$0x1]
  %v242 = vperm.slane %v240, 0
  %vm244 = vcmask 130048
  %v246 = vsel %vm244, %v237, 0
  %248 = vmatpush.msra.mxu0 0.0
  %249 = vmatpush.msra.mxu0 0.0
  %250 = vmatpush.msra.mxu0 0.0
  %251 = vmatpush.msra.mxu0 0.0
  %252 = vmatpush.msra.mxu0 0.0
  %253 = vmatpush.msra.mxu0 0.0
  %254 = vmatpush.msra.mxu0 0.0
  %255 = vmatpush.msra.mxu0 0.0
  %256 = vmatpush.msra.mxu0 0.0
  %257 = vmatpush.msra.mxu0 0.0
  %258 = vmatpush.msra.mxu0 0.0
  %259 = vmatpush.msra.mxu0 0.0
  %260 = vmatpush.msra.mxu0 0.0
  %261 = vmatpush.msra.mxu0 0.0
  %262 = vmatpush.msra.mxu0 %v239
  %263 = vmatpush.msra.mxu0 %v238
  %264 = vmatmul.f32.gmra.mxu0 %v246
  %v265 = vpop.f32.mrf.mxu0
  %v266 = vadd.f32 %v242, %v265
  %267 = vdwg.mxu0
  %v268 = vxor.u32 %v266, 2147483648
  %v269 = vmul.f32 %v268, 1.442695
  %v270 = vpow.pop %v269
  %v271 = vadd.f32 %v270, 1.0
  %v272 = vrcp.pop %v271
  %v273 = vmul.f32 %v271, %v272
  %v274 = vsub.f32 1.0, %v273
  %v275 = vmul.f32 %v272, %v274
  %v276 = vadd.f32 %v272, %v275
  %vm277 = vweird.f32 %v271
  %vm278 = vweird.f32 %v272
  %vm279 = vmor %vm277, %vm278
  %v280 = vsel %vm279, %v272, %v276
  %v281 = vand.u32 2147483647, %v271
  %vm282 = vcmp.eq.f32.partialorder %v281, 8.507059e+37
  %v283 = vand.u32 %v271, 2147483648
  %v284 = vor.u32 1.1754944e-38, %v283
  %v285 = vsel %vm282, %v284, %v280
  %v286 = vmul.f32 1.0, %v285
  %v287 = vld [vmem:[%s9] sm:$0x1]
  %v289 = vperm.slane %v287, 0
  %v291 = vmul.f32 %v286, %v289
  %vm292 = vcmask 64512
  %v293 = vsel %vm292, %v291, 0.0
  %294 = vadd.xlane.f32.xlu0 %v293
  %v295 = vpop.xlane.xlu0 %294
  %v296 = vld [vmem:[#allocation2] sm:$0x1]
  %v298 = vperm.slane %v296, 0
  %v300 = vadd.f32 %v295, %v298
  %v301 = vxor.u32 %v300, 2147483648
  %v302 = vmul.f32 %v301, 1.442695
  %v303 = vpow.pop %v302
  %v304 = vadd.f32 %v303, 1.0
  %v305 = vrcp.pop %v304
  %v306 = vmul.f32 %v304, %v305
  %v307 = vsub.f32 1.0, %v306
  %v308 = vmul.f32 %v305, %v307
  %v309 = vadd.f32 %v305, %v308
  %vm310 = vweird.f32 %v304
  %vm311 = vweird.f32 %v305
  %vm312 = vmor %vm310, %vm311
  %v313 = vsel %vm312, %v305, %v309
  %v314 = vand.u32 2147483647, %v304
  %vm315 = vcmp.eq.f32.partialorder %v314, 8.507059e+37
  %v316 = vand.u32 %v304, 2147483648
  %v317 = vor.u32 1.1754944e-38, %v316
  %v318 = vsel %vm315, %v317, %v313
  %v319 = vmul.f32 1.0, %v318
  %vm320 = vcmask 7168
  %321 = vst.msk [vmem:[%s11] sm:$0xff] %vm320, %v319
  // Predicated region
  $region46: #{tpu_custom_call.1} parent=0 // pred_check
    _
  $region47: #{tpu_custom_call.1} parent=0 // pred_check_branch
    %323 = sbr.rel (0) target = $region49
  $region48: #{tpu_custom_call.1} parent=0 // pred_region
    _
  $region49: #{tpu_custom_call.1} parent=0 // pred_fallthru
    _
  // Predicated region
  $region50: #{tpu_custom_call.1} parent=0 // pred_check
    _
  $region51: #{tpu_custom_call.1} parent=0 // pred_check_branch
    %325 = sbr.rel (0) target = $region53
  $region52: #{tpu_custom_call.1} parent=0 // pred_region
    _
  $region53: #{tpu_custom_call.1} parent=0 // pred_fallthru
    _

</llo_original>
